<compile_context>
chip_gen: v7x
topology: tpu7x:2x2x1
jax: 0.10.0
libtpu: 0.0.40
codegen_flags: <defaults>
</compile_context>

<pallas_src>
import math
import functools

import jax
import jax.numpy as jnp
from jax.experimental import pallas as pl
from jax.experimental.pallas import tpu as pltpu


def _gcn_kernel(*refs, theta, alpha, variant, residual):
    it = iter(refs)
    adj_ref = next(it)                              # (tm, tk)
    x_ref = next(it)                                # (tk, F_pad)  streamed rows of input
    h0_ref = next(it)                               # (tm, F_pad)
    xres_ref = next(it) if residual else None       # (tm, F_pad)  row tile of input
    w_ref = next(it)                                # (2*F_pad or F_pad, F_pad)
    out_ref = next(it)                              # (tm, F_pad)
    acc_ref = next(it)                              # (tm, F_pad)  f32 scratch

    k = pl.program_id(1)

    # Partial hi = adj @ x for this (row tile, k tile); f32 accumulation on MXU.
    a = adj_ref[...]
    b = x_ref[...]
    if a.dtype != b.dtype:
        # Mixed stream dtypes (e.g. bf16 / fp8 adjacency with f32 activations):
        # upcast explicitly; the HBM saving from the narrow adjacency remains.
        a = a.astype(jnp.float32)
        b = b.astype(jnp.float32)
    partial = jnp.dot(a, b, preferred_element_type=jnp.float32)

    @pl.when(k == 0)
    def _():
        acc_ref[...] = partial          # direct write: no zero-init + reload

    @pl.when(k > 0)
    def _():
        acc_ref[...] += partial

    @pl.when(k == pl.num_programs(1) - 1)
    def _():
        hi = acc_ref[...]                                   # f32 (tm, F_pad)
        h0 = h0_ref[...].astype(jnp.float32)
        r = (1.0 - alpha) * hi + alpha * h0                 # f32 (tm, F_pad)

        w_dt = w_ref.dtype
        if variant:
            # support = cat([hi, h0], 1); single fused K=2*F_pad dot
            support = jnp.concatenate([hi, h0], axis=1)     # (tm, 2*F_pad)
        else:
            support = r
        sw = jnp.dot(support.astype(w_dt), w_ref[...],
                     preferred_element_type=jnp.float32)

        out = theta * sw + (1.0 - theta) * r
        if residual:
            out = out + xres_ref[...].astype(jnp.float32)
        out_ref[...] = out.astype(out_ref.dtype)


def _round_up(x, m):
    return ((x + m - 1) // m) * m


def _pad2(a, rows, cols):
    pr, pc = rows - a.shape[0], cols - a.shape[1]
    if pr == 0 and pc == 0:
        return a
    return jnp.pad(a, ((0, pr), (0, pc)))


def _fit_tile(req, total):
    """Largest multiple of 128 that is <= req and divides total (total%128==0)."""
    total_blocks = total // 128
    d = max(1, min(req, total) // 128)
    while total_blocks % d:
        d -= 1
    return d * 128


def graph_convolution(input, adj, h0, weight, lamda, alpha, l, *,
                      variant=False, residual=False,
                      tm=None, tk=None, adj_dtype=jnp.bfloat16):
    """Pallas implementation of GraphConvolution.forward.

    tm/tk: row / contraction tiles (auto-selected if None, fitted to divisors
           of the 128-padded N so no extra adjacency padding is needed).
    adj_dtype: dtype the adjacency is streamed in. Default bfloat16 (halves the
           dominant HBM term; f32 accumulation keeps the spmm accurate).
           On v7x, jnp.float8_e4m3fn quarters adjacency bytes (validate accuracy).
           Pass jnp.float32 (or adj.dtype) for bit-faithful streaming.
    """
    N, Fin = input.shape
    Fout = weight.shape[1]
    assert weight.shape[0] == (2 * Fin if variant else Fin)
    # The (1-theta)*r term (and the residual add) require Fin == Fout, exactly
    # as the PyTorch module implicitly does for GCNII hidden layers.
    assert Fin == Fout, "GraphConvolution requires in_features == out_features"

    theta = math.log(lamda / l + 1.0)

    # ---- generation-dependent budgets --------------------------------------
    try:
        kind = jax.devices()[0].device_kind.lower()
    except Exception:  # pragma: no cover
        kind = ""
    big_vmem = ("v5" in kind) or ("v6" in kind)      # 128 MiB VMEM parts
    vmem_cap = (104 << 20) if big_vmem else (56 << 20)   # leave headroom on v7x
    multi_core = not big_vmem                        # v7x: 2 TCs share the grid

    # ---- tile selection + minimal padding (lane dims multiples of 128) -----
    N_pad = _round_up(N, 128)
    F_pad = _round_up(Fin, 128)

    if tm is None:
        tm = 2048 if F_pad <= 128 else (1024 if F_pad <= 256 else 512)
    if tk is None:
        tk = 1024
    tm = _fit_tile(tm, N_pad)
    tk = _fit_tile(tk, N_pad)
    if multi_core and N_pad >= 256 and N_pad // tm < 2:
        tm = _fit_tile(N_pad // 2, N_pad)            # keep >= 2 row tiles for 2 TCs

    # Adjacency: cast (narrow stream) and pad only when actually required —
    # avoids a full extra HBM read+write of the largest operand when N is
    # already 128-aligned and the dtype already matches.
    adj_p = adj
    if adj_dtype is not None and adj_p.dtype != jnp.dtype(adj_dtype):
        adj_p = adj_p.astype(adj_dtype)
    adj_p = _pad2(adj_p, N_pad, N_pad)
    x_p = _pad2(input, N_pad, F_pad)
    h0_p = _pad2(h0, N_pad, F_pad)
    if variant:
        # Fused weight: rows [0:F_pad) act on hi, rows [F_pad:2*F_pad) on h0,
        # matching the in-kernel concat([hi, h0], axis=1) layout.
        w_p = jnp.concatenate([_pad2(weight[:Fin], F_pad, F_pad),
                               _pad2(weight[Fin:], F_pad, F_pad)], axis=0)
    else:
        w_p = _pad2(weight, F_pad, F_pad)

    out_itemsize = jnp.dtype(input.dtype).itemsize

    def _footprint(tm_, tk_):
        w_rows = 2 * F_pad if variant else F_pad
        return (2 * tm_ * tk_ * adj_p.dtype.itemsize        # adj tiles (x2 buf)
                + 2 * tk_ * F_pad * x_p.dtype.itemsize      # x tiles (x2 buf)
                + 2 * tm_ * F_pad * h0_p.dtype.itemsize     # h0 tile (x2 buf)
                + (2 * tm_ * F_pad * x_p.dtype.itemsize if residual else 0)
                + 2 * w_rows * F_pad * w_p.dtype.itemsize   # weight (x2 buf)
                + 2 * tm_ * F_pad * out_itemsize            # out tile (x2 buf)
                + tm_ * F_pad * 4                           # f32 accumulator
                + (6 if variant else 4) * tm_ * F_pad * 4)  # epilogue f32 temps

    # Shrink tiles until they fit comfortably under the per-generation cap.
    for _ in range(32):
        if _footprint(tm, tk) <= vmem_cap - (6 << 20):
            break
        if tk >= tm and tk > 128:
            tk = _fit_tile(tk // 2, N_pad)
        elif tm > 128:
            tm = _fit_tile(tm // 2, N_pad)
        else:
            break

    grid = (N_pad // tm, N_pad // tk)

    in_specs = [
        pl.BlockSpec((tm, tk), lambda i, k: (i, k)),       # adj tile (streamed)
        pl.BlockSpec((tk, F_pad), lambda i, k: (k, 0)),    # input rows (streamed)
        pl.BlockSpec((tm, F_pad), lambda i, k: (i, 0)),    # h0 row tile (per i)
    ]
    args = [adj_p, x_p, h0_p]
    if residual:
        in_specs.append(pl.BlockSpec((tm, F_pad), lambda i, k: (i, 0)))
        args.append(x_p)
    w_rows = 2 * F_pad if variant else F_pad
    in_specs.append(pl.BlockSpec((w_rows, F_pad), lambda i, k: (0, 0)))  # W (resident)
    args.append(w_p)

    out_spec = pl.BlockSpec((tm, F_pad), lambda i, k: (i, 0))

    # ---- cost estimate (include the N_pad/tm re-reads of x) ----------------
    n_row_tiles = N_pad // tm
    flops = (2 * N_pad * N_pad * F_pad + 2 * N_pad * w_rows * F_pad)
    bytes_accessed = (N_pad * N_pad * adj_p.dtype.itemsize
                      + n_row_tiles * N_pad * F_pad * x_p.dtype.itemsize
                      + N_pad * F_pad * h0_p.dtype.itemsize
                      + (N_pad * F_pad * x_p.dtype.itemsize if residual else 0)
                      + w_rows * F_pad * w_p.dtype.itemsize
                      + N_pad * F_pad * out_itemsize)
    cost = pl.CostEstimate(flops=flops, transcendentals=0,
                           bytes_accessed=bytes_accessed)

    kernel = functools.partial(_gcn_kernel, theta=float(theta),
                               alpha=float(alpha), variant=variant,
                               residual=residual)

    out_p = pl.pallas_call(
        kernel,
        out_shape=jax.ShapeDtypeStruct((N_pad, F_pad), input.dtype),
        grid_spec=pltpu.PrefetchScalarGridSpec(
            num_scalar_prefetch=0,
            grid=grid,
            in_specs=in_specs,
            out_specs=out_spec,
            scratch_shapes=[pltpu.VMEM((tm, F_pad), jnp.float32)],
        ),
        compiler_params=pltpu.CompilerParams(
            dimension_semantics=("parallel", "arbitrary"),
            vmem_limit_bytes=int(vmem_cap)),
        cost_estimate=cost,
    )(*args)

    return out_p[:N, :Fout]


if __name__ == "__main__":
    # small, deterministic example (module math requires Fin == Fout)
    N, F = 16, 32
    lamda, alpha, l = 0.5, 0.1, 1

    key = jax.random.PRNGKey(0)
    k1, k2, k3, k4, k5 = jax.random.split(key, 5)

    x = jax.random.normal(k1, (N, F), jnp.float32)
    adj = jax.random.uniform(k2, (N, N), jnp.float32)
    adj = adj / adj.sum(axis=1, keepdims=True)       # row-normalized dense adjacency
    h0 = jax.random.normal(k3, (N, F), jnp.float32)

    # reset_parameters(): uniform(-stdv, stdv), stdv = 1/sqrt(out_features)
    stdv = 1.0 / math.sqrt(F)
    w_plain = jax.random.uniform(k4, (F, F), jnp.float32, -stdv, stdv)
    w_var = jax.random.uniform(k5, (2 * F, F), jnp.float32, -stdv, stdv)

    theta = math.log(lamda / l + 1.0)

    # --- check 1: f32 adjacency stream, variant=False, residual=False ---
    out0 = graph_convolution(x, adj, h0, w_plain, lamda, alpha, l,
                             variant=False, residual=False,
                             adj_dtype=jnp.float32)
    out0 = jax.block_until_ready(out0)
    hi_f32 = adj @ x
    sup0 = (1.0 - alpha) * hi_f32 + alpha * h0
    ref0 = theta * (sup0 @ w_plain) + (1.0 - theta) * sup0
    assert out0.shape == (N, F)
    assert jnp.allclose(out0, ref0, atol=2e-2, rtol=2e-2), "mismatch (plain/f32)"

    # --- check 2: default bf16 adjacency stream, variant=True, residual=True ---
    out1 = graph_convolution(x, adj, h0, w_var, lamda, alpha, l,
                             variant=True, residual=True)
    out1 = jax.block_until_ready(out1)
    hi_bf = adj.astype(jnp.bfloat16).astype(jnp.float32) @ x   # matches bf16 stream
    sup1 = jnp.concatenate([hi_bf, h0], axis=1)
    r1 = (1.0 - alpha) * hi_bf + alpha * h0
    ref1 = theta * (sup1 @ w_var) + (1.0 - theta) * r1 + x
    assert out1.shape == (N, F)
    assert jnp.allclose(out1, ref1, atol=2e-2, rtol=2e-2), "mismatch (variant+residual/bf16)"

    print("KERNEL_OK")
</pallas_src>

<mosaic_0001>
module attributes {stable_mosaic.version = 11 : i64} {
  func.func @_gcn_kernel(%arg0: i32, %arg1: i32, %arg2: memref<128x128xf32, #tpu.memory_space<vmem>>, %arg3: memref<128x128xf32, #tpu.memory_space<vmem>>, %arg4: memref<128x128xf32, #tpu.memory_space<vmem>>, %arg5: memref<128x128xf32, #tpu.memory_space<vmem>>, %arg6: memref<128x128xf32, #tpu.memory_space<vmem>>, %arg7: memref<128x128xf32, #tpu.memory_space<vmem>>) attributes {dimension_semantics = [#tpu.dimension_semantics<parallel>, #tpu.dimension_semantics<arbitrary>], iteration_bounds = array<i64: 1, 1>, scalar_prefetch = 0 : i64, scratch_operands = 1 : i64, tpu.core_type = #tpu.core_type<tc>, window_params = [{transform_indices = @transform_0, window_bounds = array<i64: 128, 128>}, {transform_indices = @transform_1, window_bounds = array<i64: 128, 128>}, {transform_indices = @transform_2, window_bounds = array<i64: 128, 128>}, {pipeline_mode = #tpu.pipeline_mode<synchronous>, transform_indices = @transform_3, window_bounds = array<i64: 128, 128>}, {transform_indices = @transform_4, window_bounds = array<i64: 128, 128>}]} {
    %c0 = arith.constant 0 : index
    %c0_0 = arith.constant 0 : index
    %0 = vector.load %arg2[%c0, %c0_0] : memref<128x128xf32, #tpu.memory_space<vmem>>, vector<128x128xf32>
    %c0_1 = arith.constant 0 : index
    %c0_2 = arith.constant 0 : index
    %1 = vector.load %arg3[%c0_1, %c0_2] : memref<128x128xf32, #tpu.memory_space<vmem>>, vector<128x128xf32>
    %cst = arith.constant dense<0.000000e+00> : vector<128x128xf32>
    %2 = tpu.matmul %0, %1, %cst {dimension_numbers = #tpu.dot_dimension_numbers<[1], [0], [0], [1], [0, 0, 1, 1], [], []>} : vector<128x128xf32>, vector<128x128xf32>, vector<128x128xf32> -> vector<128x128xf32>
    %c0_i32 = arith.constant 0 : i32
    %3 = arith.cmpi eq, %arg1, %c0_i32 : i32
    %4 = arith.extui %3 : i1 to i32
    %c0_i32_3 = arith.constant 0 : i32
    %5 = arith.cmpi ne, %4, %c0_i32_3 : i32
    scf.if %5 {
      %c0_8 = arith.constant 0 : index
      %c0_9 = arith.constant 0 : index
      %12 = vector.load %arg7[%c0_8, %c0_9] : memref<128x128xf32, #tpu.memory_space<vmem>>, vector<128x128xf32>
      tpu.vector_store %arg7[%c0_8, %c0_9], %2 {strides = array<i32>} : memref<128x128xf32, #tpu.memory_space<vmem>>, vector<128x128xf32>,
    } else {
    }
    %c0_i32_4 = arith.constant 0 : i32
    %6 = arith.cmpi sgt, %arg1, %c0_i32_4 : i32
    %7 = arith.extui %6 : i1 to i32
    %c0_i32_5 = arith.constant 0 : i32
    %8 = arith.cmpi ne, %7, %c0_i32_5 : i32
    scf.if %8 {
      %c0_8 = arith.constant 0 : index
      %c0_9 = arith.constant 0 : index
      %12 = vector.load %arg7[%c0_8, %c0_9] : memref<128x128xf32, #tpu.memory_space<vmem>>, vector<128x128xf32>
      %13 = arith.addf %12, %2 : vector<128x128xf32>
      %c0_10 = arith.constant 0 : index
      %c0_11 = arith.constant 0 : index
      %14 = vector.load %arg7[%c0_10, %c0_11] : memref<128x128xf32, #tpu.memory_space<vmem>>, vector<128x128xf32>
      tpu.vector_store %arg7[%c0_10, %c0_11], %13 {strides = array<i32>} : memref<128x128xf32, #tpu.memory_space<vmem>>, vector<128x128xf32>,
    } else {
    }
    %c0_i32_6 = arith.constant 0 : i32
    %9 = arith.cmpi eq, %arg1, %c0_i32_6 : i32
    %10 = arith.extui %9 : i1 to i32
    %c0_i32_7 = arith.constant 0 : i32
    %11 = arith.cmpi ne, %10, %c0_i32_7 : i32
    scf.if %11 {
      %c0_8 = arith.constant 0 : index
      %c0_9 = arith.constant 0 : index
      %12 = vector.load %arg7[%c0_8, %c0_9] : memref<128x128xf32, #tpu.memory_space<vmem>>, vector<128x128xf32>
      %c0_10 = arith.constant 0 : index
      %c0_11 = arith.constant 0 : index
      %13 = vector.load %arg4[%c0_10, %c0_11] : memref<128x128xf32, #tpu.memory_space<vmem>>, vector<128x128xf32>
      %cst_12 = arith.constant 0.899999976 : f32
      %14 = vector.broadcast %cst_12 : f32 to vector<128x128xf32>
      %15 = arith.mulf %14, %12 : vector<128x128xf32>
      %cst_13 = arith.constant 1.000000e-01 : f32
      %16 = vector.broadcast %cst_13 : f32 to vector<128x128xf32>
      %17 = arith.mulf %16, %13 : vector<128x128xf32>
      %18 = arith.addf %15, %17 : vector<128x128xf32>
      %c0_14 = arith.constant 0 : index
      %c0_15 = arith.constant 0 : index
      %19 = vector.load %arg5[%c0_14, %c0_15] : memref<128x128xf32, #tpu.memory_space<vmem>>, vector<128x128xf32>
      %cst_16 = arith.constant dense<0.000000e+00> : vector<128x128xf32>
      %20 = tpu.matmul %18, %19, %cst_16 {dimension_numbers = #tpu.dot_dimension_numbers<[1], [0], [0], [1], [0, 0, 1, 1], [], []>} : vector<128x128xf32>, vector<128x128xf32>, vector<128x128xf32> -> vector<128x128xf32>
      %cst_17 = arith.constant 0.405465096 : f32
      %21 = vector.broadcast %cst_17 : f32 to vector<128x128xf32>
      %22 = arith.mulf %21, %20 : vector<128x128xf32>
      %cst_18 = arith.constant 0.594534874 : f32
      %23 = vector.broadcast %cst_18 : f32 to vector<128x128xf32>
      %24 = arith.mulf %23, %18 : vector<128x128xf32>
      %25 = arith.addf %22, %24 : vector<128x128xf32>
      %c0_19 = arith.constant 0 : index
      %c0_20 = arith.constant 0 : index
      %26 = vector.load %arg6[%c0_19, %c0_20] : memref<128x128xf32, #tpu.memory_space<vmem>>, vector<128x128xf32>
      tpu.vector_store %arg6[%c0_19, %c0_20], %25 {strides = array<i32>} : memref<128x128xf32, #tpu.memory_space<vmem>>, vector<128x128xf32>,
    } else {
    }
    return
  }
  func.func @transform_0(%arg0: i32, %arg1: i32) -> (i32, i32) {
    %c0_i32 = arith.constant 0 : i32
    return %arg0, %arg1 : i32, i32
  }
  func.func @transform_1(%arg0: i32, %arg1: i32) -> (i32, i32) {
    %c0_i32 = arith.constant 0 : i32
    %c0_i32_0 = arith.constant 0 : i32
    return %arg1, %c0_i32 : i32, i32
  }
  func.func @transform_2(%arg0: i32, %arg1: i32) -> (i32, i32) {
    %c0_i32 = arith.constant 0 : i32
    %c0_i32_0 = arith.constant 0 : i32
    return %arg0, %c0_i32 : i32, i32
  }
  func.func @transform_3(%arg0: i32, %arg1: i32) -> (i32, i32) {
    %c0_i32 = arith.constant 0 : i32
    %c0_i32_0 = arith.constant 0 : i32
    %c0_i32_1 = arith.constant 0 : i32
    return %c0_i32, %c0_i32_0 : i32, i32
  }
  func.func @transform_4(%arg0: i32, %arg1: i32) -> (i32, i32) {
    %c0_i32 = arith.constant 0 : i32
    %c0_i32_0 = arith.constant 0 : i32
    return %arg0, %c0_i32 : i32, i32
  }
}

</mosaic_0001>

<llo_original>
// kernel: tpu_custom_call.1
$region0: #{tpu_custom_call.1}
  #allocation0 [shape = 'u32[]', space=smem, size = 0x4, offset = 0x4, fixed_abs, tag = 'smem constant byte address 0x4 - core index']
  #allocation1 [shape = 'u32[144,128]{1,0:T(1,128)}', space=vmem, size = 0x12000, scoped, tag = 'internal scratch']
  #allocation2 [shape = 'f32[128,128]{1,0:T(8,128)}', space=vmem, size = 0x10000, scoped, tag = 'scratch operand']
  %s0 = inlined_call_operand.hbm [shape: f32[128,128], index: 0, kind: input, shape index: {}]
  %s1 = inlined_call_operand.hbm [shape: f32[128,128], index: 1, kind: input, shape index: {}]
  %s2 = inlined_call_operand.hbm [shape: f32[128,128], index: 2, kind: input, shape index: {}]
  %s3 = inlined_call_operand.hbm [shape: f32[128,128], index: 3, kind: input, shape index: {}]
  %s4 = inlined_call_operand.hbm [shape: f32[128,128], index: 4, kind: output, shape index: {}]
  %s5 = sld [smem:[#allocation0]]
  $region54: #{tpu_custom_call.1} parent=0
    _
  %s7 = ssub.s32 1, %s5
  %s8 = scalar_select 0, %s7, %s5
  $region1: #{tpu_custom_call.1} parent=0
    #allocation3 [shape = 'u8[65536]{0}', space=vmem, size = 0x10000, scoped, tag = 'input window, operand 0, single buffered']
    #allocation4 [shape = 's32[1]{0}', space=sflag, size = 0x4, scoped, tag = 'scoped memory for tpu_custom_call.1']
    #allocation5 [shape = 's32[1]{0}', space=sflag, size = 0x4, scoped, tag = 'scoped memory for tpu_custom_call.1']
    #allocation6 [shape = 'u8[65536]{0}', space=vmem, size = 0x10000, scoped, tag = 'input window, operand 1, single buffered']
    #allocation7 [shape = 's32[1]{0}', space=sflag, size = 0x4, scoped, tag = 'scoped memory for tpu_custom_call.1']
    #allocation8 [shape = 'u8[65536]{0}', space=vmem, size = 0x10000, scoped, tag = 'input window, operand 2, single buffered']
    #allocation9 [shape = 'u8[65536]{0}', space=vmem, size = 0x10000, scoped, tag = 'input window, operand 3, single buffered']
    #allocation10 [shape = 's32[1]{0}', space=sflag, size = 0x4, scoped, tag = 'scoped memory for tpu_custom_call.1']
    #allocation11 [shape = 'u8[65536]{0}', space=vmem, size = 0x10000, scoped, tag = 'output window, operand 0, single buffered']
    %9 = vsyncpa [#allocation4], 0
    %10 = vsyncpa [#allocation7], 0
    %11 = vsyncpa [#allocation10], 0
    %12 = vsyncpa [#allocation5], 0
    // Predicated region
    $region2: #{tpu_custom_call.1} parent=1 // pred_check
      _
    $region3: #{tpu_custom_call.1} parent=1 // pred_check_branch
      %14 = sbr.rel (0) target = $region5
    $region4: #{tpu_custom_call.1} parent=1 // pred_region
      %s16 = ssub.s32 2048, 2048
      %17 = vsyncadd [#allocation4], %s16
      %s18 = sshll.u32 [#allocation3], 4
      %s19 = int_to_ptr.vmem [resolvable:$true] %s18
      %24 = dma.hbm_to_vmem [thread:$0]  %s0, 2048, %s19, [#allocation4], 128, 128, 8
    $region5: #{tpu_custom_call.1} parent=1 // pred_fallthru
      _
    // Predicated region
    $region6: #{tpu_custom_call.1} parent=1 // pred_check
      _
    $region7: #{tpu_custom_call.1} parent=1 // pred_check_branch
      %26 = sbr.rel (0) target = $region9
    $region8: #{tpu_custom_call.1} parent=1 // pred_region
      %s28 = ssub.s32 2048, 2048
      %29 = vsyncadd [#allocation7], %s28
      %s30 = sshll.u32 [#allocation6], 4
      %s31 = int_to_ptr.vmem [resolvable:$true] %s30
      %36 = dma.hbm_to_vmem [thread:$0]  %s1, 2048, %s31, [#allocation7], 128, 128, 8
    $region9: #{tpu_custom_call.1} parent=1 // pred_fallthru
      _
    // Predicated region
    $region10: #{tpu_custom_call.1} parent=1 // pred_check
      _
    $region11: #{tpu_custom_call.1} parent=1 // pred_check_branch
      %38 = sbr.rel (0) target = $region13
    $region12: #{tpu_custom_call.1} parent=1 // pred_region
      %s40 = ssub.s32 2048, 2048
      %41 = vsyncadd [#allocation7], %s40
      %s42 = sshll.u32 [#allocation8], 4
      %s43 = int_to_ptr.vmem [resolvable:$true] %s42
      %48 = dma.hbm_to_vmem [thread:$0]  %s2, 2048, %s43, [#allocation7], 128, 128, 8
    $region13: #{tpu_custom_call.1} parent=1 // pred_fallthru
      _
    // Predicated region
    $region14: #{tpu_custom_call.1} parent=1 // pred_check
      _
    $region15: #{tpu_custom_call.1} parent=1 // pred_check_branch
      %50 = sbr.rel (0) target = $region17
    $region16: #{tpu_custom_call.1} parent=1 // pred_region
      %s52 = ssub.s32 2048, 2048
      %53 = vsyncadd [#allocation10], %s52
      %s54 = sshll.u32 [#allocation9], 4
      %s55 = int_to_ptr.vmem [resolvable:$true] %s54
      %60 = dma.hbm_to_vmem [thread:$0]  %s3, 2048, %s55, [#allocation10], 128, 128, 8
    $region17: #{tpu_custom_call.1} parent=1 // pred_fallthru
      _
    // Predicated region
    $region18: #{tpu_custom_call.1} parent=1 // pred_check
      _
    $region19: #{tpu_custom_call.1} parent=1 // pred_check_branch
      %62 = sbr.rel (0) target = $region21
    $region20: #{tpu_custom_call.1} parent=1 // pred_region
      %63 = dma.done [#allocation4], 2048
    $region21: #{tpu_custom_call.1} parent=1 // pred_fallthru
      _
    // Predicated region
    $region22: #{tpu_custom_call.1} parent=1 // pred_check
      _
    $region23: #{tpu_custom_call.1} parent=1 // pred_check_branch
      %65 = sbr.rel (0) target = $region25
    $region24: #{tpu_custom_call.1} parent=1 // pred_region
      %66 = dma.done [#allocation7], 2048
    $region25: #{tpu_custom_call.1} parent=1 // pred_fallthru
      _
    // Predicated region
    $region26: #{tpu_custom_call.1} parent=1 // pred_check
      _
    $region27: #{tpu_custom_call.1} parent=1 // pred_check_branch
      %68 = sbr.rel (0) target = $region29
    $region28: #{tpu_custom_call.1} parent=1 // pred_region
      %69 = dma.done [#allocation7], 2048
    $region29: #{tpu_custom_call.1} parent=1 // pred_fallthru
      _
    // Predicated region
    $region30: #{tpu_custom_call.1} parent=1 // pred_check
      _
    $region31: #{tpu_custom_call.1} parent=1 // pred_check_branch
      %71 = sbr.rel (0) target = $region33
    $region32: #{tpu_custom_call.1} parent=1 // pred_region
      %72 = dma.done [#allocation10], 2048
    $region33: #{tpu_custom_call.1} parent=1 // pred_fallthru
      _
    %v73 = vld [vmem:[#allocation3] sm:$0xff]
    %v74 = vld [vmem:[#allocation3 + $0x8] sm:$0xff]
    %v75 = vld [vmem:[#allocation3 + $0x10] sm:$0xff]
    %v76 = vld [vmem:[#allocation3 + $0x18] sm:$0xff]
    %v77 = vld [vmem:[#allocation3 + $0x20] sm:$0xff]
    %v78 = vld [vmem:[#allocation3 + $0x28] sm:$0xff]
    %v79 = vld [vmem:[#allocation3 + $0x30] sm:$0xff]
    %v80 = vld [vmem:[#allocation3 + $0x38] sm:$0xff]
    %v81 = vld [vmem:[#allocation3 + $0x40] sm:$0xff]
    %v82 = vld [vmem:[#allocation3 + $0x48] sm:$0xff]
    %v83 = vld [vmem:[#allocation3 + $0x50] sm:$0xff]
    %v84 = vld [vmem:[#allocation3 + $0x58] sm:$0xff]
    %v85 = vld [vmem:[#allocation3 + $0x60] sm:$0xff]
    %v86 = vld [vmem:[#allocation3 + $0x68] sm:$0xff]
    %v87 = vld [vmem:[#allocation3 + $0x70] sm:$0xff]
    %v88 = vld [vmem:[#allocation3 + $0x78] sm:$0xff]
    %v89 = vld [vmem:[#allocation6] sm:$0xff]
    %v90 = vld [vmem:[#allocation6 + $0x8] sm:$0xff]
    %v91 = vld [vmem:[#allocation6 + $0x10] sm:$0xff]
    %v92 = vld [vmem:[#allocation6 + $0x18] sm:$0xff]
    %v93 = vld [vmem:[#allocation6 + $0x20] sm:$0xff]
    %v94 = vld [vmem:[#allocation6 + $0x28] sm:$0xff]
    %v95 = vld [vmem:[#allocation6 + $0x30] sm:$0xff]
    %v96 = vld [vmem:[#allocation6 + $0x38] sm:$0xff]
    %v97 = vld [vmem:[#allocation6 + $0x40] sm:$0xff]
    %v98 = vld [vmem:[#allocation6 + $0x48] sm:$0xff]
    %v99 = vld [vmem:[#allocation6 + $0x50] sm:$0xff]
    %v100 = vld [vmem:[#allocation6 + $0x58] sm:$0xff]
    %v101 = vld [vmem:[#allocation6 + $0x60] sm:$0xff]
    %v102 = vld [vmem:[#allocation6 + $0x68] sm:$0xff]
    %v103 = vld [vmem:[#allocation6 + $0x70] sm:$0xff]
    %v104 = vld [vmem:[#allocation6 + $0x78] sm:$0xff]
    %105 = vmatprep.subr.mxu0 0.0
    %106 = vmatpush1.msra.mxu0 %v89
    %107 = vmatprep.subr.mxu0 0.0
    %108 = vmatpush1.msra.mxu0 %v90
    %109 = vmatprep.subr.mxu0 0.0
    %110 = vmatpush1.msra.mxu0 %v91
    %111 = vmatprep.subr.mxu0 0.0
    %112 = vmatpush1.msra.mxu0 %v92
    %113 = vmatprep.subr.mxu0 0.0
    %114 = vmatpush1.msra.mxu0 %v93
    %115 = vmatprep.subr.mxu0 0.0
    %116 = vmatpush1.msra.mxu0 %v94
    %117 = vmatprep.subr.mxu0 0.0
    %118 = vmatpush1.msra.mxu0 %v95
    %119 = vmatprep.subr.mxu0 0.0
    %120 = vmatpush1.msra.mxu0 %v96
    %121 = vmatprep.subr.mxu0 0.0
    %122 = vmatpush1.msra.mxu0 %v97
    %123 = vmatprep.subr.mxu0 0.0
    %124 = vmatpush1.msra.mxu0 %v98
    %125 = vmatprep.subr.mxu0 0.0
    %126 = vmatpush1.msra.mxu0 %v99
    %127 = vmatprep.subr.mxu0 0.0
    %128 = vmatpush1.msra.mxu0 %v100
    %129 = vmatprep.subr.mxu0 0.0
    %130 = vmatpush1.msra.mxu0 %v101
    %131 = vmatprep.subr.mxu0 0.0
    %132 = vmatpush1.msra.mxu0 %v102
    %133 = vmatprep.subr.mxu0 0.0
    %134 = vmatpush1.msra.mxu0 %v103
    %135 = vmatprep.subr.mxu0 0.0
    %136 = vmatpush1.msra.mxu0 %v104
    %137 = vmatprep.subr.mxu0 0.0
    %138 = vmatpush1.msra.mxu0 0.0
    %139 = vmatprep.subr.mxu0 0.0
    %140 = vmatpush1.msra.mxu0 0.0
    %141 = vmatprep.subr.mxu0 0.0
    %142 = vmatpush1.msra.mxu0 0.0
    %143 = vmatprep.subr.mxu0 0.0
    %144 = vmatpush1.msra.mxu0 0.0
    %145 = vmatprep.subr.mxu0 0.0
    %146 = vmatpush1.msra.mxu0 0.0
    %147 = vmatprep.subr.mxu0 0.0
    %148 = vmatpush1.msra.mxu0 0.0
    %149 = vmatprep.subr.mxu0 0.0
    %150 = vmatpush1.msra.mxu0 0.0
    %151 = vmatprep.subr.mxu0 0.0
    %152 = vmatpush1.msra.mxu0 0.0
    %153 = vmatprep.subr.mxu0 0.0
    %154 = vmatpush1.msra.mxu0 0.0
    %155 = vmatprep.subr.mxu0 0.0
    %156 = vmatpush1.msra.mxu0 0.0
    %157 = vmatprep.subr.mxu0 0.0
    %158 = vmatpush1.msra.mxu0 0.0
    %159 = vmatprep.subr.mxu0 0.0
    %160 = vmatpush1.msra.mxu0 0.0
    %161 = vmatprep.subr.mxu0 0.0
    %162 = vmatpush1.msra.mxu0 0.0
    %163 = vmatprep.subr.mxu0 0.0
    %164 = vmatpush1.msra.mxu0 0.0
    %165 = vmatprep.subr.mxu0 0.0
    %166 = vmatpush1.msra.mxu0 0.0
    %167 = vmatprep.subr.mxu0 0.0
    %168 = vmatpush1.msra.mxu0 0.0
    %169 = vmatprep.mubr.f32.mxu0 0.0
    %170 = vmatmul.mubr.f32.gmra.mrb[0].mxu0 %v73
    %v171 = vpop.f32.mrb[0].mxu0
    %v172 = vadd.f32 0.0, %v171
    %v173 = vpop.f32.mrb[0].mxu0
    %174 = vmatprep.mubr.f32.mxu0 0.0
    %175 = vmatmul.mubr.f32.gmra.mrb[0].mxu0 %v74
    %v176 = vpop.f32.mrb[0].mxu0
    %v177 = vadd.f32 0.0, %v176
    %v178 = vpop.f32.mrb[0].mxu0
    %179 = vmatprep.mubr.f32.mxu0 0.0
    %180 = vmatmul.mubr.f32.gmra.mrb[0].mxu0 %v75
    %v181 = vpop.f32.mrb[0].mxu0
    %v182 = vadd.f32 0.0, %v181
    %v183 = vpop.f32.mrb[0].mxu0
    %184 = vmatprep.mubr.f32.mxu0 0.0
    %185 = vmatmul.mubr.f32.gmra.mrb[0].mxu0 %v76
    %v186 = vpop.f32.mrb[0].mxu0
    %v187 = vadd.f32 0.0, %v186
    %v188 = vpop.f32.mrb[0].mxu0
    %189 = vmatprep.mubr.f32.mxu0 0.0
    %190 = vmatmul.mubr.f32.gmra.mrb[0].mxu0 %v77
    %v191 = vpop.f32.mrb[0].mxu0
    %v192 = vadd.f32 0.0, %v191
    %v193 = vpop.f32.mrb[0].mxu0
    %194 = vmatprep.mubr.f32.mxu0 0.0
    %195 = vmatmul.mubr.f32.gmra.mrb[0].mxu0 %v78
    %v196 = vpop.f32.mrb[0].mxu0
    %v197 = vadd.f32 0.0, %v196
    %v198 = vpop.f32.mrb[0].mxu0
    %199 = vmatprep.mubr.f32.mxu0 0.0
    %200 = vmatmul.mubr.f32.gmra.mrb[0].mxu0 %v79
    %v201 = vpop.f32.mrb[0].mxu0
    %v202 = vadd.f32 0.0, %v201
    %v203 = vpop.f32.mrb[0].mxu0
    %204 = vmatprep.mubr.f32.mxu0 0.0
    %205 = vmatmul.mubr.f32.gmra.mrb[0].mxu0 %v80
    %v206 = vpop.f32.mrb[0].mxu0
    %v207 = vadd.f32 0.0, %v206
    %v208 = vpop.f32.mrb[0].mxu0
    %209 = vmatprep.mubr.f32.mxu0 0.0
    %210 = vmatmul.mubr.f32.gmra.mrb[0].mxu0 %v81
    %v211 = vpop.f32.mrb[0].mxu0
    %v212 = vadd.f32 0.0, %v211
    %v213 = vpop.f32.mrb[0].mxu0
    %214 = vmatprep.mubr.f32.mxu0 0.0
    %215 = vmatmul.mubr.f32.gmra.mrb[0].mxu0 %v82
    %v216 = vpop.f32.mrb[0].mxu0
    %v217 = vadd.f32 0.0, %v216
    %v218 = vpop.f32.mrb[0].mxu0
    %219 = vmatprep.mubr.f32.mxu0 0.0
    %220 = vmatmul.mubr.f32.gmra.mrb[0].mxu0 %v83
    %v221 = vpop.f32.mrb[0].mxu0
    %v222 = vadd.f32 0.0, %v221
    %v223 = vpop.f32.mrb[0].mxu0
    %224 = vmatprep.mubr.f32.mxu0 0.0
    %225 = vmatmul.mubr.f32.gmra.mrb[0].mxu0 %v84
    %v226 = vpop.f32.mrb[0].mxu0
    %v227 = vadd.f32 0.0, %v226
    %v228 = vpop.f32.mrb[0].mxu0
    %229 = vmatprep.mubr.f32.mxu0 0.0
    %230 = vmatmul.mubr.f32.gmra.mrb[0].mxu0 %v85
    %v231 = vpop.f32.mrb[0].mxu0
    %v232 = vadd.f32 0.0, %v231
    %v233 = vpop.f32.mrb[0].mxu0
    %234 = vmatprep.mubr.f32.mxu0 0.0
    %235 = vmatmul.mubr.f32.gmra.mrb[0].mxu0 %v86
    %v236 = vpop.f32.mrb[0].mxu0
    %v237 = vadd.f32 0.0, %v236
    %v238 = vpop.f32.mrb[0].mxu0
    %239 = vmatprep.mubr.f32.mxu0 0.0
    %240 = vmatmul.mubr.f32.gmra.mrb[0].mxu0 %v87
    %v241 = vpop.f32.mrb[0].mxu0
    %v242 = vadd.f32 0.0, %v241
    %v243 = vpop.f32.mrb[0].mxu0
    %244 = vmatprep.mubr.f32.mxu0 0.0
    %245 = vmatmul.mubr.f32.gmra.mrb[0].mxu0 %v88
    %v246 = vpop.f32.mrb[0].mxu0
    %v247 = vadd.f32 0.0, %v246
    %v248 = vpop.f32.mrb[0].mxu0
    %249 = vdwg.mxu0
    %p250 = scmp.eq.s32.totalorder 0, 0
    // Predicated region
    $region34: #{tpu_custom_call.1} parent=1 // pred_check
      %p251 = pneg %p250
    $region35: #{tpu_custom_call.1} parent=1 // pred_check_branch
      %253 = sbr.rel (%p251) target = $region37
    $region36: #{tpu_custom_call.1} parent=1 // pred_region
      %254 = vst [vmem:[#allocation2] sm:$0xff] %v172
      %255 = vst [vmem:[#allocation2 + $0x8] sm:$0xff] %v177
      %256 = vst [vmem:[#allocation2 + $0x10] sm:$0xff] %v182
      %257 = vst [vmem:[#allocation2 + $0x18] sm:$0xff] %v187
      %258 = vst [vmem:[#allocation2 + $0x20] sm:$0xff] %v192
      %259 = vst [vmem:[#allocation2 + $0x28] sm:$0xff] %v197
      %260 = vst [vmem:[#allocation2 + $0x30] sm:$0xff] %v202
      %261 = vst [vmem:[#allocation2 + $0x38] sm:$0xff] %v207
      %262 = vst [vmem:[#allocation2 + $0x40] sm:$0xff] %v212
      %263 = vst [vmem:[#allocation2 + $0x48] sm:$0xff] %v217
      %264 = vst [vmem:[#allocation2 + $0x50] sm:$0xff] %v222
      %265 = vst [vmem:[#allocation2 + $0x58] sm:$0xff] %v227
      %266 = vst [vmem:[#allocation2 + $0x60] sm:$0xff] %v232
      %267 = vst [vmem:[#allocation2 + $0x68] sm:$0xff] %v237
      %268 = vst [vmem:[#allocation2 + $0x70] sm:$0xff] %v242
      %269 = vst [vmem:[#allocation2 + $0x78] sm:$0xff] %v247
    $region37: #{tpu_custom_call.1} parent=1 // pred_fallthru
      _
    %p270 = scmp.gt.s32.totalorder 0, 0
    // Predicated region
    $region38: #{tpu_custom_call.1} parent=1 // pred_check
      %p271 = pneg %p270
    $region39: #{tpu_custom_call.1} parent=1 // pred_check_branch
      %273 = sbr.rel (%p271) target = $region41
    $region40: #{tpu_custom_call.1} parent=1 // pred_region
      %v274 = vld [vmem:[#allocation2] sm:$0xff]
      %v275 = vld [vmem:[#allocation2 + $0x8] sm:$0xff]
      %v276 = vld [vmem:[#allocation2 + $0x10] sm:$0xff]
      %v277 = vld [vmem:[#allocation2 + $0x18] sm:$0xff]
      %v278 = vld [vmem:[#allocation2 + $0x20] sm:$0xff]
      %v279 = vld [vmem:[#allocation2 + $0x28] sm:$0xff]
      %v280 = vld [vmem:[#allocation2 + $0x30] sm:$0xff]
      %v281 = vld [vmem:[#allocation2 + $0x38] sm:$0xff]
      %v282 = vld [vmem:[#allocation2 + $0x40] sm:$0xff]
      %v283 = vld [vmem:[#allocation2 + $0x48] sm:$0xff]
      %v284 = vld [vmem:[#allocation2 + $0x50] sm:$0xff]
      %v285 = vld [vmem:[#allocation2 + $0x58] sm:$0xff]
      %v286 = vld [vmem:[#allocation2 + $0x60] sm:$0xff]
      %v287 = vld [vmem:[#allocation2 + $0x68] sm:$0xff]
      %v288 = vld [vmem:[#allocation2 + $0x70] sm:$0xff]
      %v289 = vld [vmem:[#allocation2 + $0x78] sm:$0xff]
      %v290 = vadd.f32 %v274, %v172
      %v291 = vadd.f32 %v275, %v177
      %v292 = vadd.f32 %v276, %v182
      %v293 = vadd.f32 %v277, %v187
      %v294 = vadd.f32 %v278, %v192
      %v295 = vadd.f32 %v279, %v197
      %v296 = vadd.f32 %v280, %v202
      %v297 = vadd.f32 %v281, %v207
      %v298 = vadd.f32 %v282, %v212
      %v299 = vadd.f32 %v283, %v217
      %v300 = vadd.f32 %v284, %v222
      %v301 = vadd.f32 %v285, %v227
      %v302 = vadd.f32 %v286, %v232
      %v303 = vadd.f32 %v287, %v237
      %v304 = vadd.f32 %v288, %v242
      %v305 = vadd.f32 %v289, %v247
      %306 = vst [vmem:[#allocation2] sm:$0xff] %v290
      %307 = vst [vmem:[#allocation2 + $0x8] sm:$0xff] %v291
      %308 = vst [vmem:[#allocation2 + $0x10] sm:$0xff] %v292
      %309 = vst [vmem:[#allocation2 + $0x18] sm:$0xff] %v293
      %310 = vst [vmem:[#allocation2 + $0x20] sm:$0xff] %v294
      %311 = vst [vmem:[#allocation2 + $0x28] sm:$0xff] %v295
      %312 = vst [vmem:[#allocation2 + $0x30] sm:$0xff] %v296
      %313 = vst [vmem:[#allocation2 + $0x38] sm:$0xff] %v297
      %314 = vst [vmem:[#allocation2 + $0x40] sm:$0xff] %v298
      %315 = vst [vmem:[#allocation2 + $0x48] sm:$0xff] %v299
      %316 = vst [vmem:[#allocation2 + $0x50] sm:$0xff] %v300
      %317 = vst [vmem:[#allocation2 + $0x58] sm:$0xff] %v301
      %318 = vst [vmem:[#allocation2 + $0x60] sm:$0xff] %v302
      %319 = vst [vmem:[#allocation2 + $0x68] sm:$0xff] %v303
      %320 = vst [vmem:[#allocation2 + $0x70] sm:$0xff] %v304
      %321 = vst [vmem:[#allocation2 + $0x78] sm:$0xff] %v305
    $region41: #{tpu_custom_call.1} parent=1 // pred_fallthru
      _
    // Predicated region
    $region42: #{tpu_custom_call.1} parent=1 // pred_check
      %p322 = pneg %p250
    $region43: #{tpu_custom_call.1} parent=1 // pred_check_branch
      %324 = sbr.rel (%p322) target = $region45
    $region44: #{tpu_custom_call.1} parent=1 // pred_region
      %v325 = vld [vmem:[#allocation2] sm:$0xff]
      %v326 = vld [vmem:[#allocation2 + $0x8] sm:$0xff]
      %v327 = vld [vmem:[#allocation2 + $0x10] sm:$0xff]
      %v328 = vld [vmem:[#allocation2 + $0x18] sm:$0xff]
      %v329 = vld [vmem:[#allocation2 + $0x20] sm:$0xff]
      %v330 = vld [vmem:[#allocation2 + $0x28] sm:$0xff]
      %v331 = vld [vmem:[#allocation2 + $0x30] sm:$0xff]
      %v332 = vld [vmem:[#allocation2 + $0x38] sm:$0xff]
      %v333 = vld [vmem:[#allocation2 + $0x40] sm:$0xff]
      %v334 = vld [vmem:[#allocation2 + $0x48] sm:$0xff]
      %v335 = vld [vmem:[#allocation2 + $0x50] sm:$0xff]
      %v336 = vld [vmem:[#allocation2 + $0x58] sm:$0xff]
      %v337 = vld [vmem:[#allocation2 + $0x60] sm:$0xff]
      %v338 = vld [vmem:[#allocation2 + $0x68] sm:$0xff]
      %v339 = vld [vmem:[#allocation2 + $0x70] sm:$0xff]
      %v340 = vld [vmem:[#allocation2 + $0x78] sm:$0xff]
      %v341 = vld [vmem:[#allocation8] sm:$0xff]
      %v342 = vld [vmem:[#allocation8 + $0x8] sm:$0xff]
      %v343 = vld [vmem:[#allocation8 + $0x10] sm:$0xff]
      %v344 = vld [vmem:[#allocation8 + $0x18] sm:$0xff]
      %v345 = vld [vmem:[#allocation8 + $0x20] sm:$0xff]
      %v346 = vld [vmem:[#allocation8 + $0x28] sm:$0xff]
      %v347 = vld [vmem:[#allocation8 + $0x30] sm:$0xff]
      %v348 = vld [vmem:[#allocation8 + $0x38] sm:$0xff]
      %v349 = vld [vmem:[#allocation8 + $0x40] sm:$0xff]
      %v350 = vld [vmem:[#allocation8 + $0x48] sm:$0xff]
      %v351 = vld [vmem:[#allocation8 + $0x50] sm:$0xff]
      %v352 = vld [vmem:[#allocation8 + $0x58] sm:$0xff]
      %v353 = vld [vmem:[#allocation8 + $0x60] sm:$0xff]
      %v354 = vld [vmem:[#allocation8 + $0x68] sm:$0xff]
      %v355 = vld [vmem:[#allocation8 + $0x70] sm:$0xff]
      %v356 = vld [vmem:[#allocation8 + $0x78] sm:$0xff]
      %v357 = vmul.f32 %v325, 0.9
      %v358 = vmul.f32 %v326, 0.9
      %v359 = vmul.f32 %v327, 0.9
      %v360 = vmul.f32 %v328, 0.9
      %v361 = vmul.f32 %v329, 0.9
      %v362 = vmul.f32 %v330, 0.9
      %v363 = vmul.f32 %v331, 0.9
      %v364 = vmul.f32 %v332, 0.9
      %v365 = vmul.f32 %v333, 0.9
      %v366 = vmul.f32 %v334, 0.9
      %v367 = vmul.f32 %v335, 0.9
      %v368 = vmul.f32 %v336, 0.9
      %v369 = vmul.f32 %v337, 0.9
      %v370 = vmul.f32 %v338, 0.9
      %v371 = vmul.f32 %v339, 0.9
      %v372 = vmul.f32 %v340, 0.9
      %v373 = vmul.f32 %v341, 0.1
      %v374 = vmul.f32 %v342, 0.1
      %v375 = vmul.f32 %v343, 0.1
      %v376 = vmul.f32 %v344, 0.1
      %v377 = vmul.f32 %v345, 0.1
      %v378 = vmul.f32 %v346, 0.1
      %v379 = vmul.f32 %v347, 0.1
      %v380 = vmul.f32 %v348, 0.1
      %v381 = vmul.f32 %v349, 0.1
      %v382 = vmul.f32 %v350, 0.1
      %v383 = vmul.f32 %v351, 0.1
      %v384 = vmul.f32 %v352, 0.1
      %v385 = vmul.f32 %v353, 0.1
      %v386 = vmul.f32 %v354, 0.1
      %v387 = vmul.f32 %v355, 0.1
      %v388 = vmul.f32 %v356, 0.1
      %v389 = vadd.f32 %v357, %v373
      %v390 = vadd.f32 %v358, %v374
      %v391 = vadd.f32 %v359, %v375
      %v392 = vadd.f32 %v360, %v376
      %v393 = vadd.f32 %v361, %v377
      %v394 = vadd.f32 %v362, %v378
      %v395 = vadd.f32 %v363, %v379
      %v396 = vadd.f32 %v364, %v380
      %v397 = vadd.f32 %v365, %v381
      %v398 = vadd.f32 %v366, %v382
      %v399 = vadd.f32 %v367, %v383
      %v400 = vadd.f32 %v368, %v384
      %v401 = vadd.f32 %v369, %v385
      %v402 = vadd.f32 %v370, %v386
      %v403 = vadd.f32 %v371, %v387
      %v404 = vadd.f32 %v372, %v388
      %v405 = vld [vmem:[#allocation9] sm:$0xff]
      %v406 = vld [vmem:[#allocation9 + $0x8] sm:$0xff]
      %v407 = vld [vmem:[#allocation9 + $0x10] sm:$0xff]
      %v408 = vld [vmem:[#allocation9 + $0x18] sm:$0xff]
      %v409 = vld [vmem:[#allocation9 + $0x20] sm:$0xff]
      %v410 = vld [vmem:[#allocation9 + $0x28] sm:$0xff]
      %v411 = vld [vmem:[#allocation9 + $0x30] sm:$0xff]
      %v412 = vld [vmem:[#allocation9 + $0x38] sm:$0xff]
      %v413 = vld [vmem:[#allocation9 + $0x40] sm:$0xff]
      %v414 = vld [vmem:[#allocation9 + $0x48] sm:$0xff]
      %v415 = vld [vmem:[#allocation9 + $0x50] sm:$0xff]
      %v416 = vld [vmem:[#allocation9 + $0x58] sm:$0xff]
      %v417 = vld [vmem:[#allocation9 + $0x60] sm:$0xff]
      %v418 = vld [vmem:[#allocation9 + $0x68] sm:$0xff]
      %v419 = vld [vmem:[#allocation9 + $0x70] sm:$0xff]
      %v420 = vld [vmem:[#allocation9 + $0x78] sm:$0xff]
      %421 = vmatprep.subr.mxu0 0.0
      %422 = vmatpush1.msra.mxu0 %v405
      %423 = vmatprep.subr.mxu0 0.0
      %424 = vmatpush1.msra.mxu0 %v406
      %425 = vmatprep.subr.mxu0 0.0
      %426 = vmatpush1.msra.mxu0 %v407
      %427 = vmatprep.subr.mxu0 0.0
      %428 = vmatpush1.msra.mxu0 %v408
      %429 = vmatprep.subr.mxu0 0.0
      %430 = vmatpush1.msra.mxu0 %v409
      %431 = vmatprep.subr.mxu0 0.0
      %432 = vmatpush1.msra.mxu0 %v410
      %433 = vmatprep.subr.mxu0 0.0
      %434 = vmatpush1.msra.mxu0 %v411
      %435 = vmatprep.subr.mxu0 0.0
      %436 = vmatpush1.msra.mxu0 %v412
      %437 = vmatprep.subr.mxu0 0.0
      %438 = vmatpush1.msra.mxu0 %v413
      %439 = vmatprep.subr.mxu0 0.0
      %440 = vmatpush1.msra.mxu0 %v414
      %441 = vmatprep.subr.mxu0 0.0
      %442 = vmatpush1.msra.mxu0 %v415
      %443 = vmatprep.subr.mxu0 0.0
      %444 = vmatpush1.msra.mxu0 %v416
      %445 = vmatprep.subr.mxu0 0.0
      %446 = vmatpush1.msra.mxu0 %v417
      %447 = vmatprep.subr.mxu0 0.0
      %448 = vmatpush1.msra.mxu0 %v418
      %449 = vmatprep.subr.mxu0 0.0
      %450 = vmatpush1.msra.mxu0 %v419
      %451 = vmatprep.subr.mxu0 0.0
      %452 = vmatpush1.msra.mxu0 %v420
      %453 = vmatprep.subr.mxu0 0.0
      %454 = vmatpush1.msra.mxu0 0.0
      %455 = vmatprep.subr.mxu0 0.0
      %456 = vmatpush1.msra.mxu0 0.0
      %457 = vmatprep.subr.mxu0 0.0
      %458 = vmatpush1.msra.mxu0 0.0
      %459 = vmatprep.subr.mxu0 0.0
      %460 = vmatpush1.msra.mxu0 0.0
      %461 = vmatprep.subr.mxu0 0.0
      %462 = vmatpush1.msra.mxu0 0.0
      %463 = vmatprep.subr.mxu0 0.0
      %464 = vmatpush1.msra.mxu0 0.0
      %465 = vmatprep.subr.mxu0 0.0
      %466 = vmatpush1.msra.mxu0 0.0
      %467 = vmatprep.subr.mxu0 0.0
      %468 = vmatpush1.msra.mxu0 0.0
      %469 = vmatprep.subr.mxu0 0.0
      %470 = vmatpush1.msra.mxu0 0.0
      %471 = vmatprep.subr.mxu0 0.0
      %472 = vmatpush1.msra.mxu0 0.0
      %473 = vmatprep.subr.mxu0 0.0
      %474 = vmatpush1.msra.mxu0 0.0
      %475 = vmatprep.subr.mxu0 0.0
      %476 = vmatpush1.msra.mxu0 0.0
      %477 = vmatprep.subr.mxu0 0.0
      %478 = vmatpush1.msra.mxu0 0.0
      %479 = vmatprep.subr.mxu0 0.0
      %480 = vmatpush1.msra.mxu0 0.0
      %481 = vmatprep.subr.mxu0 0.0
      %482 = vmatpush1.msra.mxu0 0.0
      %483 = vmatprep.subr.mxu0 0.0
      %484 = vmatpush1.msra.mxu0 0.0
      %485 = vmatprep.mubr.f32.mxu0 0.0
      %486 = vmatmul.mubr.f32.gmra.mrb[0].mxu0 %v389
      %v487 = vpop.f32.mrb[0].mxu0
      %v488 = vadd.f32 0.0, %v487
      %v489 = vpop.f32.mrb[0].mxu0
      %490 = vmatprep.mubr.f32.mxu0 0.0
      %491 = vmatmul.mubr.f32.gmra.mrb[0].mxu0 %v390
      %v492 = vpop.f32.mrb[0].mxu0
      %v493 = vadd.f32 0.0, %v492
      %v494 = vpop.f32.mrb[0].mxu0
      %495 = vmatprep.mubr.f32.mxu0 0.0
      %496 = vmatmul.mubr.f32.gmra.mrb[0].mxu0 %v391
      %v497 = vpop.f32.mrb[0].mxu0
      %v498 = vadd.f32 0.0, %v497
      %v499 = vpop.f32.mrb[0].mxu0
      %500 = vmatprep.mubr.f32.mxu0 0.0
      %501 = vmatmul.mubr.f32.gmra.mrb[0].mxu0 %v392
      %v502 = vpop.f32.mrb[0].mxu0
      %v503 = vadd.f32 0.0, %v502
      %v504 = vpop.f32.mrb[0].mxu0
      %505 = vmatprep.mubr.f32.mxu0 0.0
      %506 = vmatmul.mubr.f32.gmra.mrb[0].mxu0 %v393
      %v507 = vpop.f32.mrb[0].mxu0
      %v508 = vadd.f32 0.0, %v507
      %v509 = vpop.f32.mrb[0].mxu0
      %510 = vmatprep.mubr.f32.mxu0 0.0
      %511 = vmatmul.mubr.f32.gmra.mrb[0].mxu0 %v394
      %v512 = vpop.f32.mrb[0].mxu0
      %v513 = vadd.f32 0.0, %v512
      %v514 = vpop.f32.mrb[0].mxu0
      %515 = vmatprep.mubr.f32.mxu0 0.0
      %516 = vmatmul.mubr.f32.gmra.mrb[0].mxu0 %v395
      %v517 = vpop.f32.mrb[0].mxu0
      %v518 = vadd.f32 0.0, %v517
      %v519 = vpop.f32.mrb[0].mxu0
      %520 = vmatprep.mubr.f32.mxu0 0.0
      %521 = vmatmul.mubr.f32.gmra.mrb[0].mxu0 %v396
      %v522 = vpop.f32.mrb[0].mxu0
      %v523 = vadd.f32 0.0, %v522
      %v524 = vpop.f32.mrb[0].mxu0
      %525 = vmatprep.mubr.f32.mxu0 0.0
      %526 = vmatmul.mubr.f32.gmra.mrb[0].mxu0 %v397
      %v527 = vpop.f32.mrb[0].mxu0
      %v528 = vadd.f32 0.0, %v527
      %v529 = vpop.f32.mrb[0].mxu0
      %530 = vmatprep.mubr.f32.mxu0 0.0
      %531 = vmatmul.mubr.f32.gmra.mrb[0].mxu0 %v398
      %v532 = vpop.f32.mrb[0].mxu0
      %v533 = vadd.f32 0.0, %v532
      %v534 = vpop.f32.mrb[0].mxu0
      %535 = vmatprep.mubr.f32.mxu0 0.0
      %536 = vmatmul.mubr.f32.gmra.mrb[0].mxu0 %v399
      %v537 = vpop.f32.mrb[0].mxu0
      %v538 = vadd.f32 0.0, %v537
      %v539 = vpop.f32.mrb[0].mxu0
      %540 = vmatprep.mubr.f32.mxu0 0.0
      %541 = vmatmul.mubr.f32.gmra.mrb[0].mxu0 %v400
      %v542 = vpop.f32.mrb[0].mxu0
      %v543 = vadd.f32 0.0, %v542
      %v544 = vpop.f32.mrb[0].mxu0
      %545 = vmatprep.mubr.f32.mxu0 0.0
      %546 = vmatmul.mubr.f32.gmra.mrb[0].mxu0 %v401
      %v547 = vpop.f32.mrb[0].mxu0
      %v548 = vadd.f32 0.0, %v547
      %v549 = vpop.f32.mrb[0].mxu0
      %550 = vmatprep.mubr.f32.mxu0 0.0
      %551 = vmatmul.mubr.f32.gmra.mrb[0].mxu0 %v402
      %v552 = vpop.f32.mrb[0].mxu0
      %v553 = vadd.f32 0.0, %v552
      %v554 = vpop.f32.mrb[0].mxu0
      %555 = vmatprep.mubr.f32.mxu0 0.0
      %556 = vmatmul.mubr.f32.gmra.mrb[0].mxu0 %v403
      %v557 = vpop.f32.mrb[0].mxu0
      %v558 = vadd.f32 0.0, %v557
      %v559 = vpop.f32.mrb[0].mxu0
      %560 = vmatprep.mubr.f32.mxu0 0.0
      %561 = vmatmul.mubr.f32.gmra.mrb[0].mxu0 %v404
      %v562 = vpop.f32.mrb[0].mxu0
      %v563 = vadd.f32 0.0, %v562
      %v564 = vpop.f32.mrb[0].mxu0
      %565 = vdwg.mxu0
      %v566 = vmul.f32 %v488, 0.4054651
      %v567 = vmul.f32 %v493, 0.4054651
      %v568 = vmul.f32 %v498, 0.4054651
      %v569 = vmul.f32 %v503, 0.4054651
      %v570 = vmul.f32 %v508, 0.4054651
      %v571 = vmul.f32 %v513, 0.4054651
      %v572 = vmul.f32 %v518, 0.4054651
      %v573 = vmul.f32 %v523, 0.4054651
      %v574 = vmul.f32 %v528, 0.4054651
      %v575 = vmul.f32 %v533, 0.4054651
      %v576 = vmul.f32 %v538, 0.4054651
      %v577 = vmul.f32 %v543, 0.4054651
      %v578 = vmul.f32 %v548, 0.4054651
      %v579 = vmul.f32 %v553, 0.4054651
      %v580 = vmul.f32 %v558, 0.4054651
      %v581 = vmul.f32 %v563, 0.4054651
      %v582 = vmul.f32 %v389, 0.5945349
      %v583 = vmul.f32 %v390, 0.5945349
      %v584 = vmul.f32 %v391, 0.5945349
      %v585 = vmul.f32 %v392, 0.5945349
      %v586 = vmul.f32 %v393, 0.5945349
      %v587 = vmul.f32 %v394, 0.5945349
      %v588 = vmul.f32 %v395, 0.5945349
      %v589 = vmul.f32 %v396, 0.5945349
      %v590 = vmul.f32 %v397, 0.5945349
      %v591 = vmul.f32 %v398, 0.5945349
      %v592 = vmul.f32 %v399, 0.5945349
      %v593 = vmul.f32 %v400, 0.5945349
      %v594 = vmul.f32 %v401, 0.5945349
      %v595 = vmul.f32 %v402, 0.5945349
      %v596 = vmul.f32 %v403, 0.5945349
      %v597 = vmul.f32 %v404, 0.5945349
      %v598 = vadd.f32 %v566, %v582
      %v599 = vadd.f32 %v567, %v583
      %v600 = vadd.f32 %v568, %v584
      %v601 = vadd.f32 %v569, %v585
      %v602 = vadd.f32 %v570, %v586
      %v603 = vadd.f32 %v571, %v587
      %v604 = vadd.f32 %v572, %v588
      %v605 = vadd.f32 %v573, %v589
      %v606 = vadd.f32 %v574, %v590
      %v607 = vadd.f32 %v575, %v591
      %v608 = vadd.f32 %v576, %v592
      %v609 = vadd.f32 %v577, %v593
      %v610 = vadd.f32 %v578, %v594
      %v611 = vadd.f32 %v579, %v595
      %v612 = vadd.f32 %v580, %v596
      %v613 = vadd.f32 %v581, %v597
      %614 = vst [vmem:[#allocation11] sm:$0xff] %v598
      %615 = vst [vmem:[#allocation11 + $0x8] sm:$0xff] %v599
      %616 = vst [vmem:[#allocation11 + $0x10] sm:$0xff] %v600
      %617 = vst [vmem:[#allocation11 + $0x18] sm:$0xff] %v601
      %618 = vst [vmem:[#allocation11 + $0x20] sm:$0xff] %v602
      %619 = vst [vmem:[#allocation11 + $0x28] sm:$0xff] %v603
      %620 = vst [vmem:[#allocation11 + $0x30] sm:$0xff] %v604
      %621 = vst [vmem:[#allocation11 + $0x38] sm:$0xff] %v605
      %622 = vst [vmem:[#allocation11 + $0x40] sm:$0xff] %v606
      %623 = vst [vmem:[#allocation11 + $0x48] sm:$0xff] %v607
      %624 = vst [vmem:[#allocation11 + $0x50] sm:$0xff] %v608
      %625 = vst [vmem:[#allocation11 + $0x58] sm:$0xff] %v609
      %626 = vst [vmem:[#allocation11 + $0x60] sm:$0xff] %v610
      %627 = vst [vmem:[#allocation11 + $0x68] sm:$0xff] %v611
      %628 = vst [vmem:[#allocation11 + $0x70] sm:$0xff] %v612
      %629 = vst [vmem:[#allocation11 + $0x78] sm:$0xff] %v613
    $region45: #{tpu_custom_call.1} parent=1 // pred_fallthru
      _
    // Predicated region
    $region46: #{tpu_custom_call.1} parent=1 // pred_check
      _
    $region47: #{tpu_custom_call.1} parent=1 // pred_check_branch
      %631 = sbr.rel (0) target = $region49
    $region48: #{tpu_custom_call.1} parent=1 // pred_region
      %s633 = ssub.s32 2048, 2048
      %634 = vsyncadd [#allocation5], %s633
      %s635 = sshll.u32 [#allocation11], 4
      %s636 = int_to_ptr.vmem [resolvable:$true] %s635
      %641 = dma.vmem_to_hbm [thread:$0]  %s636, 2048, %s4, [#allocation5], 128, 128, 8
    $region49: #{tpu_custom_call.1} parent=1 // pred_fallthru
      _
    // Predicated region
    $region50: #{tpu_custom_call.1} parent=1 // pred_check
      _
    $region51: #{tpu_custom_call.1} parent=1 // pred_check_branch
      %643 = sbr.rel (0) target = $region53
    $region52: #{tpu_custom_call.1} parent=1 // pred_region
      %644 = dma.done [#allocation5], 2048
    $region53: #{tpu_custom_call.1} parent=1 // pred_fallthru
      _
    %645 = vsyncpa [#allocation4], 1
    %646 = vsyncpa [#allocation7], 1
    %647 = vsyncpa [#allocation10], 1
    %648 = vsyncpa [#allocation5], 1

</llo_original>
